<compile_context>
chip_gen: v7x
topology: tpu7x:2x2x1
jax: 0.10.0
libtpu: 0.0.40
codegen_flags: <defaults>
</compile_context>

<pallas_src>
import jax
import jax.numpy as jnp
from jax.experimental import pallas as pl
from jax.experimental.pallas import tpu as pltpu

LN_EPS = 1e-5  # PyTorch nn.LayerNorm default


def _round_up(x, m):
    return ((x + m - 1) // m) * m


def _layer_norm(h, gamma, beta):
    """Two-pass LayerNorm (f32): robust against E[h^2]-mu^2 cancellation."""
    mu = jnp.mean(h, axis=-1, keepdims=True)
    d = h - mu
    var = jnp.mean(d * d, axis=-1, keepdims=True)
    return d * jax.lax.rsqrt(var + LN_EPS) * gamma + beta


def _make_kernel(matmul_dtype):
    def kernel(x_ref,
               w1_ref, b1_ref, g1_ref, be1_ref,
               w2_ref, b2_ref, g2_ref, be2_ref,
               w3_ref, b3_ref, g3_ref, be3_ref,
               o_ref):
        x = x_ref[...]

        # ---- Layer 1: Linear -> LayerNorm -> ReLU -------------------------
        # Tiny-K matmul stays on the MXU: it is idle on this HBM-bound kernel
        # and keeps VALU/XLU slack free for the three LayerNorms.
        h = jnp.dot(x.astype(matmul_dtype), w1_ref[...],
                    preferred_element_type=jnp.float32) + b1_ref[...]
        h = jnp.maximum(_layer_norm(h, g1_ref[...], be1_ref[...]), 0.0)

        # ---- Layer 2: Linear -> LayerNorm -> ReLU -------------------------
        h = jnp.dot(h.astype(matmul_dtype), w2_ref[...],
                    preferred_element_type=jnp.float32) + b2_ref[...]
        h = jnp.maximum(_layer_norm(h, g2_ref[...], be2_ref[...]), 0.0)

        # ---- Layer 3: Linear -> LayerNorm (no trailing ReLU) --------------
        h = jnp.dot(h.astype(matmul_dtype), w3_ref[...],
                    preferred_element_type=jnp.float32) + b3_ref[...]
        h = _layer_norm(h, g3_ref[...], be3_ref[...])

        # True-width store (no lane padding, no concatenate copy).
        o_ref[...] = h.astype(o_ref.dtype)

    return kernel


def _vmem_capacity_bytes():
    try:
        info = pltpu.get_tpu_info()
        cap = getattr(info, "vmem_capacity_bytes", None)
        if cap:
            return int(cap)
    except Exception:
        pass
    return 64 * 1024 * 1024  # conservative floor (v7x per-TensorCore VMEM)


def _phys_param_bytes(arr):
    """Physical VMEM footprint of a small 2-D param (sublane/lane padded)."""
    r, c = arr.shape
    itemsize = jnp.dtype(arr.dtype).itemsize
    sub = 8 * (4 // itemsize)  # 8 sublanes for f32, 16 packed for bf16
    return _round_up(r, sub) * _round_up(c, 128) * itemsize


def _auto_tile_n(N, c_in, c_out, x_itemsize, out_itemsize, vmem_cap):
    lane_in = _round_up(c_in, 128)      # physical lane width of the x tile
    lane_out = _round_up(c_out, 128)    # physical lane width of intermediates
    # Lane-padded VMEM bytes per tile row (this is what the compiler sees).
    per_row = (2 * lane_in * x_itemsize        # x tile, double buffered
               + 2 * lane_out * out_itemsize   # out tile, double buffered
               + 6 * lane_out * 4)             # live f32 intermediates
    budget = vmem_cap // 2                     # headroom for params / scratch
    tile_vmem = budget // max(per_row, 1)
    # Target ~2 MiB of output HBM traffic per grid step so the ~0.35 us
    # per-step overhead stays small even on v7x's 3.2 TB/s HBM.
    tile_dma = (2 << 20) // max(c_out * out_itemsize, 1)
    tile = max(8, (min(tile_vmem, tile_dma, 32768) // 8) * 8)
    # >= 4 grid steps: >= 2 pipelined steps per TensorCore on v7x, and
    # prologue/epilogue overlap on single-core chips.
    tile = min(tile, max(8, _round_up(pl.cdiv(N, 4), 8)))
    # Prefer a tile that divides N (no padded rows, no wrapper row slice),
    # but never shrink the tile by more than 25% to get it.
    if N % tile != 0 and N % 8 == 0:
        floor = max(8, (tile - tile // 4) // 8 * 8)
        for cand in range(tile, floor - 1, -8):
            if N % cand == 0:
                tile = cand
                break
    return int(tile)


def single_input_embedding(x, params, *, tile_n=None,
                           matmul_dtype=jnp.bfloat16, out_dtype=None):
    """x: [N, in_channel]; params: dict from init_params (f32, W stored [in,out])."""
    N, c_in = x.shape
    c_out = params["w1"].shape[1]
    matmul_dtype = jnp.dtype(matmul_dtype)
    if out_dtype is None:
        # Output writes dominate HBM traffic: emit bf16 on the fast path,
        # f32 only when the caller asked for the exact-precision path.
        out_dtype = x.dtype if matmul_dtype == jnp.float32 else matmul_dtype
    out_dtype = jnp.dtype(out_dtype)

    vmem_cap = _vmem_capacity_bytes()
    x_itemsize = jnp.dtype(x.dtype).itemsize
    out_itemsize = out_dtype.itemsize

    if tile_n is None:
        tile_n = _auto_tile_n(N, c_in, c_out, x_itemsize, out_itemsize, vmem_cap)
    tile_n = max(8, _round_up(int(tile_n), 8))

    # Pad rows only if no suitable divisor tile exists; padded rows are
    # computed and discarded (LayerNorm is per-row, so they stay isolated).
    n_pad = _round_up(N, tile_n)
    if n_pad != N:
        x = jnp.pad(x, ((0, n_pad - N), (0, 0)))
    grid = (n_pad // tile_n,)

    # Weights cast once at the boundary; bias / LN params stay f32.
    ordered = [params["w1"].astype(matmul_dtype), params["b1"], params["g1"], params["be1"],
               params["w2"].astype(matmul_dtype), params["b2"], params["g2"], params["be2"],
               params["w3"].astype(matmul_dtype), params["b3"], params["g3"], params["be3"]]

    row_spec_in = pl.BlockSpec((tile_n, c_in), lambda i: (i, 0))
    row_spec_out = pl.BlockSpec((tile_n, c_out), lambda i: (i, 0))

    def full_spec(arr):
        return pl.BlockSpec(arr.shape, lambda i: (0,) * arr.ndim)

    kernel = _make_kernel(matmul_dtype)

    # VMEM budget with lane-padded physical sizes (params counted at their
    # default double-buffered footprint).
    lane_in = _round_up(c_in, 128)
    lane_out = _round_up(c_out, 128)
    param_phys = sum(_phys_param_bytes(a) for a in ordered)
    param_bytes = sum(int(a.size) * jnp.dtype(a.dtype).itemsize for a in ordered)
    needed = (2 * tile_n * lane_in * x_itemsize
              + 2 * tile_n * lane_out * out_itemsize
              + 6 * tile_n * lane_out * 4
              + 2 * param_phys)
    vmem_limit = int(min(max(needed + needed // 2, 32 << 20),
                         (vmem_cap * 9) // 10))

    cost = pl.CostEstimate(
        flops=2 * n_pad * c_out * (c_in + 2 * c_out) + 15 * n_pad * c_out,
        transcendentals=3 * n_pad,  # one rsqrt per row per LayerNorm
        bytes_accessed=(n_pad * c_in * x_itemsize
                        + n_pad * c_out * out_itemsize   # true bytes written
                        + param_bytes))

    out = pl.pallas_call(
        kernel,
        out_shape=jax.ShapeDtypeStruct((n_pad, c_out), out_dtype),
        grid_spec=pltpu.PrefetchScalarGridSpec(
            num_scalar_prefetch=0,
            grid=grid,
            in_specs=[row_spec_in] + [full_spec(a) for a in ordered],
            out_specs=row_spec_out,
        ),
        compiler_params=pltpu.CompilerParams(
            dimension_semantics=("parallel",),
            vmem_limit_bytes=vmem_limit),
        cost_estimate=cost,
    )(x, *ordered)

    if n_pad != N:
        out = out[:N]  # only reached when no divisor tile exists (e.g. N % 8 != 0)
    return out


def _xavier_uniform(key, fan_in, fan_out):
    limit = (6.0 / (fan_in + fan_out)) ** 0.5
    # Stored [in, out] (transpose of torch's [out, in]); xavier is symmetric
    # in fan_in/fan_out so the distribution matches.
    return jax.random.uniform(key, (fan_in, fan_out), jnp.float32, -limit, limit)


def init_params(key, in_channel, out_channel):
    k1, k2, k3 = jax.random.split(key, 3)
    zeros = jnp.zeros((1, out_channel), jnp.float32)
    ones = jnp.ones((1, out_channel), jnp.float32)
    return {
        "w1": _xavier_uniform(k1, in_channel, out_channel), "b1": zeros,
        "g1": ones, "be1": zeros,
        "w2": _xavier_uniform(k2, out_channel, out_channel), "b2": zeros,
        "g2": ones, "be2": zeros,
        "w3": _xavier_uniform(k3, out_channel, out_channel), "b3": zeros,
        "g3": ones, "be3": zeros,
    }


def _layer_norm_ref(h, gamma, beta):
    mu = jnp.mean(h, axis=-1, keepdims=True)
    var = jnp.mean((h - mu) ** 2, axis=-1, keepdims=True)
    return (h - mu) * jax.lax.rsqrt(var + LN_EPS) * gamma + beta


def reference(x, p):
    """Pure-JAX reference for correctness."""
    h = x @ p["w1"] + p["b1"]
    h = jnp.maximum(_layer_norm_ref(h, p["g1"], p["be1"]), 0.0)
    h = h @ p["w2"] + p["b2"]
    h = jnp.maximum(_layer_norm_ref(h, p["g2"], p["be2"]), 0.0)
    h = h @ p["w3"] + p["b3"]
    return _layer_norm_ref(h, p["g3"], p["be3"])


if __name__ == "__main__":
    in_channel, out_channel, N = 4, 32, 64
    key = jax.random.PRNGKey(0)
    kx, kp = jax.random.split(key)

    x = jax.random.normal(kx, (N, in_channel), jnp.float32)
    params = init_params(kp, in_channel, out_channel)
    ref = reference(x, params)

    # Exact-precision path (f32 matmuls, f32 output): tight check vs reference.
    out_f32 = jax.block_until_ready(
        single_input_embedding(x, params, matmul_dtype=jnp.float32))
    assert out_f32.shape == (N, out_channel)
    assert out_f32.dtype == jnp.float32
    assert jnp.allclose(out_f32, ref, atol=1e-4, rtol=1e-4), "f32 mismatch vs reference"

    # Default fast path (bf16 matmul inputs + bf16 output; f32 accumulation/LN).
    out_bf16 = jax.block_until_ready(single_input_embedding(x, params))
    assert out_bf16.shape == (N, out_channel)
    assert out_bf16.dtype == jnp.bfloat16
    assert jnp.allclose(out_bf16.astype(jnp.float32), ref, atol=1e-1, rtol=1e-1), \
        "bf16 mismatch vs reference"

    print("KERNEL_OK")
</pallas_src>

<mosaic_0001>
module attributes {stable_mosaic.version = 11 : i64} {
  func.func @kernel(%arg0: i32, %arg1: memref<16x4xf32, #tpu.memory_space<vmem>>, %arg2: memref<4x32xf32, #tpu.memory_space<vmem>>, %arg3: memref<1x32xf32, #tpu.memory_space<vmem>>, %arg4: memref<1x32xf32, #tpu.memory_space<vmem>>, %arg5: memref<1x32xf32, #tpu.memory_space<vmem>>, %arg6: memref<32x32xf32, #tpu.memory_space<vmem>>, %arg7: memref<1x32xf32, #tpu.memory_space<vmem>>, %arg8: memref<1x32xf32, #tpu.memory_space<vmem>>, %arg9: memref<1x32xf32, #tpu.memory_space<vmem>>, %arg10: memref<32x32xf32, #tpu.memory_space<vmem>>, %arg11: memref<1x32xf32, #tpu.memory_space<vmem>>, %arg12: memref<1x32xf32, #tpu.memory_space<vmem>>, %arg13: memref<1x32xf32, #tpu.memory_space<vmem>>, %arg14: memref<16x32xf32, #tpu.memory_space<vmem>>) attributes {dimension_semantics = [#tpu.dimension_semantics<parallel>], iteration_bounds = array<i64: 4>, scalar_prefetch = 0 : i64, scratch_operands = 0 : i64, tpu.core_type = #tpu.core_type<tc>, window_params = [{transform_indices = @transform_0, window_bounds = array<i64: 16, 4>}, {pipeline_mode = #tpu.pipeline_mode<synchronous>, transform_indices = @transform_1, window_bounds = array<i64: 4, 32>}, {pipeline_mode = #tpu.pipeline_mode<synchronous>, transform_indices = @transform_2, window_bounds = array<i64: 1, 32>}, {pipeline_mode = #tpu.pipeline_mode<synchronous>, transform_indices = @transform_3, window_bounds = array<i64: 1, 32>}, {pipeline_mode = #tpu.pipeline_mode<synchronous>, transform_indices = @transform_4, window_bounds = array<i64: 1, 32>}, {pipeline_mode = #tpu.pipeline_mode<synchronous>, transform_indices = @transform_5, window_bounds = array<i64: 32, 32>}, {pipeline_mode = #tpu.pipeline_mode<synchronous>, transform_indices = @transform_6, window_bounds = array<i64: 1, 32>}, {pipeline_mode = #tpu.pipeline_mode<synchronous>, transform_indices = @transform_7, window_bounds = array<i64: 1, 32>}, {pipeline_mode = #tpu.pipeline_mode<synchronous>, transform_indices = @transform_8, window_bounds = array<i64: 1, 32>}, {pipeline_mode = #tpu.pipeline_mode<synchronous>, transform_indices = @transform_9, window_bounds = array<i64: 32, 32>}, {pipeline_mode = #tpu.pipeline_mode<synchronous>, transform_indices = @transform_10, window_bounds = array<i64: 1, 32>}, {pipeline_mode = #tpu.pipeline_mode<synchronous>, transform_indices = @transform_11, window_bounds = array<i64: 1, 32>}, {pipeline_mode = #tpu.pipeline_mode<synchronous>, transform_indices = @transform_12, window_bounds = array<i64: 1, 32>}, {transform_indices = @transform_13, window_bounds = array<i64: 16, 32>}]} {
    %c0 = arith.constant 0 : index
    %c0_0 = arith.constant 0 : index
    %0 = vector.load %arg1[%c0, %c0_0] : memref<16x4xf32, #tpu.memory_space<vmem>>, vector<16x4xf32>
    %c0_1 = arith.constant 0 : index
    %c0_2 = arith.constant 0 : index
    %1 = vector.load %arg2[%c0_1, %c0_2] : memref<4x32xf32, #tpu.memory_space<vmem>>, vector<4x32xf32>
    %cst = arith.constant dense<0.000000e+00> : vector<16x32xf32>
    %2 = tpu.matmul %0, %1, %cst {dimension_numbers = #tpu.dot_dimension_numbers<[1], [0], [0], [1], [0, 0, 1, 1], [], []>} : vector<16x4xf32>, vector<4x32xf32>, vector<16x32xf32> -> vector<16x32xf32>
    %c0_3 = arith.constant 0 : index
    %c0_4 = arith.constant 0 : index
    %3 = vector.load %arg3[%c0_3, %c0_4] : memref<1x32xf32, #tpu.memory_space<vmem>>, vector<1x32xf32>
    %4 = vector.broadcast %3 : vector<1x32xf32> to vector<16x32xf32>
    %5 = arith.addf %2, %4 : vector<16x32xf32>
    %c0_5 = arith.constant 0 : index
    %c0_6 = arith.constant 0 : index
    %6 = vector.load %arg4[%c0_5, %c0_6] : memref<1x32xf32, #tpu.memory_space<vmem>>, vector<1x32xf32>
    %c0_7 = arith.constant 0 : index
    %c0_8 = arith.constant 0 : index
    %7 = vector.load %arg5[%c0_7, %c0_8] : memref<1x32xf32, #tpu.memory_space<vmem>>, vector<1x32xf32>
    %cst_9 = arith.constant dense<0.000000e+00> : vector<16xf32>
    %8 = vector.multi_reduction <add>, %5, %cst_9 [1] : vector<16x32xf32> to vector<16xf32>
    %9 = vector.shape_cast %8 : vector<16xf32> to vector<16x1xf32>
    %cst_10 = arith.constant 3.200000e+01 : f32
    %10 = vector.broadcast %cst_10 : f32 to vector<16x1xf32>
    %11 = arith.divf %9, %10 : vector<16x1xf32>
    %12 = vector.broadcast %11 : vector<16x1xf32> to vector<16x32xf32>
    %13 = arith.subf %5, %12 : vector<16x32xf32>
    %14 = arith.mulf %13, %13 : vector<16x32xf32>
    %cst_11 = arith.constant dense<0.000000e+00> : vector<16xf32>
    %15 = vector.multi_reduction <add>, %14, %cst_11 [1] : vector<16x32xf32> to vector<16xf32>
    %16 = vector.shape_cast %15 : vector<16xf32> to vector<16x1xf32>
    %cst_12 = arith.constant 3.200000e+01 : f32
    %17 = vector.broadcast %cst_12 : f32 to vector<16x1xf32>
    %18 = arith.divf %16, %17 : vector<16x1xf32>
    %cst_13 = arith.constant 9.99999974E-6 : f32
    %19 = vector.broadcast %cst_13 : f32 to vector<16x1xf32>
    %20 = arith.addf %18, %19 : vector<16x1xf32>
    %21 = math.rsqrt %20 : vector<16x1xf32>
    %22 = vector.broadcast %21 : vector<16x1xf32> to vector<16x32xf32>
    %23 = arith.mulf %13, %22 : vector<16x32xf32>
    %24 = vector.broadcast %6 : vector<1x32xf32> to vector<16x32xf32>
    %25 = arith.mulf %23, %24 : vector<16x32xf32>
    %26 = vector.broadcast %7 : vector<1x32xf32> to vector<16x32xf32>
    %27 = arith.addf %25, %26 : vector<16x32xf32>
    %cst_14 = arith.constant 0.000000e+00 : f32
    %28 = vector.broadcast %cst_14 : f32 to vector<16x32xf32>
    %29 = arith.maximumf %27, %28 : vector<16x32xf32>
    %c0_15 = arith.constant 0 : index
    %c0_16 = arith.constant 0 : index
    %30 = vector.load %arg6[%c0_15, %c0_16] : memref<32x32xf32, #tpu.memory_space<vmem>>, vector<32x32xf32>
    %cst_17 = arith.constant dense<0.000000e+00> : vector<16x32xf32>
    %31 = tpu.matmul %29, %30, %cst_17 {dimension_numbers = #tpu.dot_dimension_numbers<[1], [0], [0], [1], [0, 0, 1, 1], [], []>} : vector<16x32xf32>, vector<32x32xf32>, vector<16x32xf32> -> vector<16x32xf32>
    %c0_18 = arith.constant 0 : index
    %c0_19 = arith.constant 0 : index
    %32 = vector.load %arg7[%c0_18, %c0_19] : memref<1x32xf32, #tpu.memory_space<vmem>>, vector<1x32xf32>
    %33 = vector.broadcast %32 : vector<1x32xf32> to vector<16x32xf32>
    %34 = arith.addf %31, %33 : vector<16x32xf32>
    %c0_20 = arith.constant 0 : index
    %c0_21 = arith.constant 0 : index
    %35 = vector.load %arg8[%c0_20, %c0_21] : memref<1x32xf32, #tpu.memory_space<vmem>>, vector<1x32xf32>
    %c0_22 = arith.constant 0 : index
    %c0_23 = arith.constant 0 : index
    %36 = vector.load %arg9[%c0_22, %c0_23] : memref<1x32xf32, #tpu.memory_space<vmem>>, vector<1x32xf32>
    %cst_24 = arith.constant dense<0.000000e+00> : vector<16xf32>
    %37 = vector.multi_reduction <add>, %34, %cst_24 [1] : vector<16x32xf32> to vector<16xf32>
    %38 = vector.shape_cast %37 : vector<16xf32> to vector<16x1xf32>
    %cst_25 = arith.constant 3.200000e+01 : f32
    %39 = vector.broadcast %cst_25 : f32 to vector<16x1xf32>
    %40 = arith.divf %38, %39 : vector<16x1xf32>
    %41 = vector.broadcast %40 : vector<16x1xf32> to vector<16x32xf32>
    %42 = arith.subf %34, %41 : vector<16x32xf32>
    %43 = arith.mulf %42, %42 : vector<16x32xf32>
    %cst_26 = arith.constant dense<0.000000e+00> : vector<16xf32>
    %44 = vector.multi_reduction <add>, %43, %cst_26 [1] : vector<16x32xf32> to vector<16xf32>
    %45 = vector.shape_cast %44 : vector<16xf32> to vector<16x1xf32>
    %cst_27 = arith.constant 3.200000e+01 : f32
    %46 = vector.broadcast %cst_27 : f32 to vector<16x1xf32>
    %47 = arith.divf %45, %46 : vector<16x1xf32>
    %cst_28 = arith.constant 9.99999974E-6 : f32
    %48 = vector.broadcast %cst_28 : f32 to vector<16x1xf32>
    %49 = arith.addf %47, %48 : vector<16x1xf32>
    %50 = math.rsqrt %49 : vector<16x1xf32>
    %51 = vector.broadcast %50 : vector<16x1xf32> to vector<16x32xf32>
    %52 = arith.mulf %42, %51 : vector<16x32xf32>
    %53 = vector.broadcast %35 : vector<1x32xf32> to vector<16x32xf32>
    %54 = arith.mulf %52, %53 : vector<16x32xf32>
    %55 = vector.broadcast %36 : vector<1x32xf32> to vector<16x32xf32>
    %56 = arith.addf %54, %55 : vector<16x32xf32>
    %cst_29 = arith.constant 0.000000e+00 : f32
    %57 = vector.broadcast %cst_29 : f32 to vector<16x32xf32>
    %58 = arith.maximumf %56, %57 : vector<16x32xf32>
    %c0_30 = arith.constant 0 : index
    %c0_31 = arith.constant 0 : index
    %59 = vector.load %arg10[%c0_30, %c0_31] : memref<32x32xf32, #tpu.memory_space<vmem>>, vector<32x32xf32>
    %cst_32 = arith.constant dense<0.000000e+00> : vector<16x32xf32>
    %60 = tpu.matmul %58, %59, %cst_32 {dimension_numbers = #tpu.dot_dimension_numbers<[1], [0], [0], [1], [0, 0, 1, 1], [], []>} : vector<16x32xf32>, vector<32x32xf32>, vector<16x32xf32> -> vector<16x32xf32>
    %c0_33 = arith.constant 0 : index
    %c0_34 = arith.constant 0 : index
    %61 = vector.load %arg11[%c0_33, %c0_34] : memref<1x32xf32, #tpu.memory_space<vmem>>, vector<1x32xf32>
    %62 = vector.broadcast %61 : vector<1x32xf32> to vector<16x32xf32>
    %63 = arith.addf %60, %62 : vector<16x32xf32>
    %c0_35 = arith.constant 0 : index
    %c0_36 = arith.constant 0 : index
    %64 = vector.load %arg12[%c0_35, %c0_36] : memref<1x32xf32, #tpu.memory_space<vmem>>, vector<1x32xf32>
    %c0_37 = arith.constant 0 : index
    %c0_38 = arith.constant 0 : index
    %65 = vector.load %arg13[%c0_37, %c0_38] : memref<1x32xf32, #tpu.memory_space<vmem>>, vector<1x32xf32>
    %cst_39 = arith.constant dense<0.000000e+00> : vector<16xf32>
    %66 = vector.multi_reduction <add>, %63, %cst_39 [1] : vector<16x32xf32> to vector<16xf32>
    %67 = vector.shape_cast %66 : vector<16xf32> to vector<16x1xf32>
    %cst_40 = arith.constant 3.200000e+01 : f32
    %68 = vector.broadcast %cst_40 : f32 to vector<16x1xf32>
    %69 = arith.divf %67, %68 : vector<16x1xf32>
    %70 = vector.broadcast %69 : vector<16x1xf32> to vector<16x32xf32>
    %71 = arith.subf %63, %70 : vector<16x32xf32>
    %72 = arith.mulf %71, %71 : vector<16x32xf32>
    %cst_41 = arith.constant dense<0.000000e+00> : vector<16xf32>
    %73 = vector.multi_reduction <add>, %72, %cst_41 [1] : vector<16x32xf32> to vector<16xf32>
    %74 = vector.shape_cast %73 : vector<16xf32> to vector<16x1xf32>
    %cst_42 = arith.constant 3.200000e+01 : f32
    %75 = vector.broadcast %cst_42 : f32 to vector<16x1xf32>
    %76 = arith.divf %74, %75 : vector<16x1xf32>
    %cst_43 = arith.constant 9.99999974E-6 : f32
    %77 = vector.broadcast %cst_43 : f32 to vector<16x1xf32>
    %78 = arith.addf %76, %77 : vector<16x1xf32>
    %79 = math.rsqrt %78 : vector<16x1xf32>
    %80 = vector.broadcast %79 : vector<16x1xf32> to vector<16x32xf32>
    %81 = arith.mulf %71, %80 : vector<16x32xf32>
    %82 = vector.broadcast %64 : vector<1x32xf32> to vector<16x32xf32>
    %83 = arith.mulf %81, %82 : vector<16x32xf32>
    %84 = vector.broadcast %65 : vector<1x32xf32> to vector<16x32xf32>
    %85 = arith.addf %83, %84 : vector<16x32xf32>
    %c0_44 = arith.constant 0 : index
    %c0_45 = arith.constant 0 : index
    %86 = vector.load %arg14[%c0_44, %c0_45] : memref<16x32xf32, #tpu.memory_space<vmem>>, vector<16x32xf32>
    tpu.vector_store %arg14[%c0_44, %c0_45], %85 {strides = array<i32>} : memref<16x32xf32, #tpu.memory_space<vmem>>, vector<16x32xf32>,
    return
  }
  func.func @transform_0(%arg0: i32) -> (i32, i32) {
    %c0_i32 = arith.constant 0 : i32
    %c0_i32_0 = arith.constant 0 : i32
    return %arg0, %c0_i32 : i32, i32
  }
  func.func @transform_1(%arg0: i32) -> (i32, i32) {
    %c0_i32 = arith.constant 0 : i32
    %c0_i32_0 = arith.constant 0 : i32
    %c0_i32_1 = arith.constant 0 : i32
    return %c0_i32, %c0_i32_0 : i32, i32
  }
  func.func @transform_2(%arg0: i32) -> (i32, i32) {
    %c0_i32 = arith.constant 0 : i32
    %c0_i32_0 = arith.constant 0 : i32
    %c0_i32_1 = arith.constant 0 : i32
    return %c0_i32, %c0_i32_0 : i32, i32
  }
  func.func @transform_3(%arg0: i32) -> (i32, i32) {
    %c0_i32 = arith.constant 0 : i32
    %c0_i32_0 = arith.constant 0 : i32
    %c0_i32_1 = arith.constant 0 : i32
    return %c0_i32, %c0_i32_0 : i32, i32
  }
  func.func @transform_4(%arg0: i32) -> (i32, i32) {
    %c0_i32 = arith.constant 0 : i32
    %c0_i32_0 = arith.constant 0 : i32
    %c0_i32_1 = arith.constant 0 : i32
    return %c0_i32, %c0_i32_0 : i32, i32
  }
  func.func @transform_5(%arg0: i32) -> (i32, i32) {
    %c0_i32 = arith.constant 0 : i32
    %c0_i32_0 = arith.constant 0 : i32
    %c0_i32_1 = arith.constant 0 : i32
    return %c0_i32, %c0_i32_0 : i32, i32
  }
  func.func @transform_6(%arg0: i32) -> (i32, i32) {
    %c0_i32 = arith.constant 0 : i32
    %c0_i32_0 = arith.constant 0 : i32
    %c0_i32_1 = arith.constant 0 : i32
    return %c0_i32, %c0_i32_0 : i32, i32
  }
  func.func @transform_7(%arg0: i32) -> (i32, i32) {
    %c0_i32 = arith.constant 0 : i32
    %c0_i32_0 = arith.constant 0 : i32
    %c0_i32_1 = arith.constant 0 : i32
    return %c0_i32, %c0_i32_0 : i32, i32
  }
  func.func @transform_8(%arg0: i32) -> (i32, i32) {
    %c0_i32 = arith.constant 0 : i32
    %c0_i32_0 = arith.constant 0 : i32
    %c0_i32_1 = arith.constant 0 : i32
    return %c0_i32, %c0_i32_0 : i32, i32
  }
  func.func @transform_9(%arg0: i32) -> (i32, i32) {
    %c0_i32 = arith.constant 0 : i32
    %c0_i32_0 = arith.constant 0 : i32
    %c0_i32_1 = arith.constant 0 : i32
    return %c0_i32, %c0_i32_0 : i32, i32
  }
  func.func @transform_10(%arg0: i32) -> (i32, i32) {
    %c0_i32 = arith.constant 0 : i32
    %c0_i32_0 = arith.constant 0 : i32
    %c0_i32_1 = arith.constant 0 : i32
    return %c0_i32, %c0_i32_0 : i32, i32
  }
  func.func @transform_11(%arg0: i32) -> (i32, i32) {
    %c0_i32 = arith.constant 0 : i32
    %c0_i32_0 = arith.constant 0 : i32
    %c0_i32_1 = arith.constant 0 : i32
    return %c0_i32, %c0_i32_0 : i32, i32
  }
  func.func @transform_12(%arg0: i32) -> (i32, i32) {
    %c0_i32 = arith.constant 0 : i32
    %c0_i32_0 = arith.constant 0 : i32
    %c0_i32_1 = arith.constant 0 : i32
    return %c0_i32, %c0_i32_0 : i32, i32
  }
  func.func @transform_13(%arg0: i32) -> (i32, i32) {
    %c0_i32 = arith.constant 0 : i32
    %c0_i32_0 = arith.constant 0 : i32
    return %arg0, %c0_i32 : i32, i32
  }
}

</mosaic_0001>

<llo_original>
// kernel: tpu_custom_call.1
$region0: #{tpu_custom_call.1}
  #allocation0 [shape = 'u32[]', space=smem, size = 0x4, offset = 0x4, fixed_abs, tag = 'smem constant byte address 0x4 - core index']
  #allocation1 [shape = 'u32[144,128]{1,0:T(1,128)}', space=vmem, size = 0x12000, scoped, tag = 'internal scratch']
  %s0 = inlined_call_operand.vmem [shape: f32[64,4], index: 0, kind: input, shape index: {}]
  %s1 = inlined_call_operand.vmem [shape: f32[4,32], index: 1, kind: input, shape index: {}]
  %s2 = inlined_call_operand.vmem [shape: f32[1,32], index: 2, kind: input, shape index: {}]
  %s3 = inlined_call_operand.vmem [shape: f32[1,32], index: 3, kind: input, shape index: {}]
  %s4 = inlined_call_operand.vmem [shape: f32[1,32], index: 4, kind: input, shape index: {}]
  %s5 = inlined_call_operand.vmem [shape: f32[32,32], index: 5, kind: input, shape index: {}]
  %s6 = inlined_call_operand.vmem [shape: f32[1,32], index: 6, kind: input, shape index: {}]
  %s7 = inlined_call_operand.vmem [shape: f32[1,32], index: 7, kind: input, shape index: {}]
  %s8 = inlined_call_operand.vmem [shape: f32[1,32], index: 8, kind: input, shape index: {}]
  %s9 = inlined_call_operand.vmem [shape: f32[32,32], index: 9, kind: input, shape index: {}]
  %s10 = inlined_call_operand.vmem [shape: f32[1,32], index: 10, kind: input, shape index: {}]
  %s11 = inlined_call_operand.vmem [shape: f32[1,32], index: 11, kind: input, shape index: {}]
  %s12 = inlined_call_operand.vmem [shape: f32[1,32], index: 12, kind: input, shape index: {}]
  %s13 = inlined_call_operand.vmem [shape: f32[64,32], index: 13, kind: output, shape index: {}]
  %s14 = sld [smem:[#allocation0]]
  $region85: #{tpu_custom_call.1} parent=0
    _
  %s16 = ssub.s32 1, %s14
  %s17 = scalar_select 0, %s16, %s14
  loop: start=0, step=1, limit=6
  $region2: #{tpu_custom_call.1} parent=0 // loop_pre_header
    _
  $region3: #{tpu_custom_call.1} parent=0 // loop_header
    %s19 = sphi 0, %s23
    %p20 = scmp.ge.s32.totalorder %s19, 6
    %s29 = sphi 0, %s31
    %s32 = sphi 0, %s29
    %s33 = sphi 0, %s32
    %s49 = sphi 0, %s33
    %s53 = sphi 0, %s53
    %s55 = sphi 0, %s53
    %s56 = sphi 0, %s55
    %s70 = sphi 0, %s56
    %s74 = sphi 0, %s74
    %s76 = sphi 0, %s74
    %s77 = sphi 0, %s76
    %s91 = sphi 0, %s77
    %s95 = sphi 0, %s95
    %s97 = sphi 0, %s95
    %s98 = sphi 0, %s97
    %s112 = sphi 0, %s98
    %s116 = sphi 0, %s116
    %s118 = sphi 0, %s116
    %s119 = sphi 0, %s118
    %s133 = sphi 0, %s119
    %s137 = sphi 0, %s137
    %s139 = sphi 0, %s137
    %s140 = sphi 0, %s139
    %s154 = sphi 0, %s140
    %s158 = sphi 0, %s158
    %s160 = sphi 0, %s158
    %s161 = sphi 0, %s160
    %s175 = sphi 0, %s161
    %s179 = sphi 0, %s179
    %s181 = sphi 0, %s179
    %s182 = sphi 0, %s181
    %s196 = sphi 0, %s182
    %s200 = sphi 0, %s200
    %s202 = sphi 0, %s200
    %s203 = sphi 0, %s202
    %s217 = sphi 0, %s203
    %s221 = sphi 0, %s221
    %s223 = sphi 0, %s221
    %s224 = sphi 0, %s223
    %s238 = sphi 0, %s224
    %s242 = sphi 0, %s242
    %s244 = sphi 0, %s242
    %s245 = sphi 0, %s244
    %s259 = sphi 0, %s245
    %s263 = sphi 0, %s263
    %s265 = sphi 0, %s263
    %s266 = sphi 0, %s265
    %s280 = sphi 0, %s266
    %s284 = sphi 0, %s284
    %s286 = sphi 0, %s284
    %s287 = sphi 0, %s286
    %s301 = sphi 0, %s287
    %s307 = sphi 0, %s309
    %s310 = sphi 0, %s307
    %s311 = sphi 0, %s310
    %s327 = sphi 0, %s311
  $region4: #{tpu_custom_call.1} parent=0 // loop_header_branch
    %22 = sbr.rel (%p20) target = $region8
  $region5: #{tpu_custom_call.1} parent=0 // loop_body
    %s24 = ssub.s32 %s19, 1
    %s25 = ssub.s32 %s19, 2
    %s26 = sadd.s32 %s19, 1
    %s27 = ssub.s32 %s19, %s26
    %p28 = scmp.eq.s32.totalorder %s27, 0
    %s30 = sadd.s32 %s29, 1
    %s31 = scalar_select %p28, %s29, %s30
    %p34 = pneg %p28
    %p35 = scmp.eq.s32.totalorder %s19, 3
    %p36 = por %p34, %p35
    %p37 = scmp.ne.s32.totalorder %s29, %s32
    %p38 = scmp.eq.s32.totalorder %s19, 0
    %p39 = por %p37, %p38
    %p40 = scmp.ne.s32.totalorder %s29, %s32
    %p41 = scmp.eq.s32.totalorder %s24, 3
    %p42 = por %p40, %p41
    %p43 = scmp.ne.s32.totalorder %s32, %s33
    %p44 = scmp.eq.s32.totalorder %s24, 0
    %p45 = por %p43, %p44
    %p46 = scmp.ne.s32.totalorder %s32, %s33
    %p47 = scmp.eq.s32.totalorder %s25, 3
    %p48 = por %p46, %p47
    %p50 = scmp.ne.s32.totalorder %s33, %s49
    %p51 = scmp.eq.s32.totalorder %s25, 0
    %p52 = por %p50, %p51
    %s54 = sadd.s32 %s53, 1
    %p57 = scmp.eq.s32.totalorder %s19, 3
    %p58 = scmp.ne.s32.totalorder %s53, %s55
    %p59 = scmp.eq.s32.totalorder %s19, 0
    %p60 = por %p58, %p59
    %p61 = scmp.ne.s32.totalorder %s53, %s55
    %p62 = scmp.eq.s32.totalorder %s24, 3
    %p63 = por %p61, %p62
    %p64 = scmp.ne.s32.totalorder %s55, %s56
    %p65 = scmp.eq.s32.totalorder %s24, 0
    %p66 = por %p64, %p65
    %p67 = scmp.ne.s32.totalorder %s55, %s56
    %p68 = scmp.eq.s32.totalorder %s25, 3
    %p69 = por %p67, %p68
    %p71 = scmp.ne.s32.totalorder %s56, %s70
    %p72 = scmp.eq.s32.totalorder %s25, 0
    %p73 = por %p71, %p72
    %s75 = sadd.s32 %s74, 1
    %p78 = scmp.eq.s32.totalorder %s19, 3
    %p79 = scmp.ne.s32.totalorder %s74, %s76
    %p80 = scmp.eq.s32.totalorder %s19, 0
    %p81 = por %p79, %p80
    %p82 = scmp.ne.s32.totalorder %s74, %s76
    %p83 = scmp.eq.s32.totalorder %s24, 3
    %p84 = por %p82, %p83
    %p85 = scmp.ne.s32.totalorder %s76, %s77
    %p86 = scmp.eq.s32.totalorder %s24, 0
    %p87 = por %p85, %p86
    %p88 = scmp.ne.s32.totalorder %s76, %s77
    %p89 = scmp.eq.s32.totalorder %s25, 3
    %p90 = por %p88, %p89
    %p92 = scmp.ne.s32.totalorder %s77, %s91
    %p93 = scmp.eq.s32.totalorder %s25, 0
    %p94 = por %p92, %p93
    %s96 = sadd.s32 %s95, 1
    %p99 = scmp.eq.s32.totalorder %s19, 3
    %p100 = scmp.ne.s32.totalorder %s95, %s97
    %p101 = scmp.eq.s32.totalorder %s19, 0
    %p102 = por %p100, %p101
    %p103 = scmp.ne.s32.totalorder %s95, %s97
    %p104 = scmp.eq.s32.totalorder %s24, 3
    %p105 = por %p103, %p104
    %p106 = scmp.ne.s32.totalorder %s97, %s98
    %p107 = scmp.eq.s32.totalorder %s24, 0
    %p108 = por %p106, %p107
    %p109 = scmp.ne.s32.totalorder %s97, %s98
    %p110 = scmp.eq.s32.totalorder %s25, 3
    %p111 = por %p109, %p110
    %p113 = scmp.ne.s32.totalorder %s98, %s112
    %p114 = scmp.eq.s32.totalorder %s25, 0
    %p115 = por %p113, %p114
    %s117 = sadd.s32 %s116, 1
    %p120 = scmp.eq.s32.totalorder %s19, 3
    %p121 = scmp.ne.s32.totalorder %s116, %s118
    %p122 = scmp.eq.s32.totalorder %s19, 0
    %p123 = por %p121, %p122
    %p124 = scmp.ne.s32.totalorder %s116, %s118
    %p125 = scmp.eq.s32.totalorder %s24, 3
    %p126 = por %p124, %p125
    %p127 = scmp.ne.s32.totalorder %s118, %s119
    %p128 = scmp.eq.s32.totalorder %s24, 0
    %p129 = por %p127, %p128
    %p130 = scmp.ne.s32.totalorder %s118, %s119
    %p131 = scmp.eq.s32.totalorder %s25, 3
    %p132 = por %p130, %p131
    %p134 = scmp.ne.s32.totalorder %s119, %s133
    %p135 = scmp.eq.s32.totalorder %s25, 0
    %p136 = por %p134, %p135
    %s138 = sadd.s32 %s137, 1
    %p141 = scmp.eq.s32.totalorder %s19, 3
    %p142 = scmp.ne.s32.totalorder %s137, %s139
    %p143 = scmp.eq.s32.totalorder %s19, 0
    %p144 = por %p142, %p143
    %p145 = scmp.ne.s32.totalorder %s137, %s139
    %p146 = scmp.eq.s32.totalorder %s24, 3
    %p147 = por %p145, %p146
    %p148 = scmp.ne.s32.totalorder %s139, %s140
    %p149 = scmp.eq.s32.totalorder %s24, 0
    %p150 = por %p148, %p149
    %p151 = scmp.ne.s32.totalorder %s139, %s140
    %p152 = scmp.eq.s32.totalorder %s25, 3
    %p153 = por %p151, %p152
    %p155 = scmp.ne.s32.totalorder %s140, %s154
    %p156 = scmp.eq.s32.totalorder %s25, 0
    %p157 = por %p155, %p156
    %s159 = sadd.s32 %s158, 1
    %p162 = scmp.eq.s32.totalorder %s19, 3
    %p163 = scmp.ne.s32.totalorder %s158, %s160
    %p164 = scmp.eq.s32.totalorder %s19, 0
    %p165 = por %p163, %p164
    %p166 = scmp.ne.s32.totalorder %s158, %s160
    %p167 = scmp.eq.s32.totalorder %s24, 3
    %p168 = por %p166, %p167
    %p169 = scmp.ne.s32.totalorder %s160, %s161
    %p170 = scmp.eq.s32.totalorder %s24, 0
    %p171 = por %p169, %p170
    %p172 = scmp.ne.s32.totalorder %s160, %s161
    %p173 = scmp.eq.s32.totalorder %s25, 3
    %p174 = por %p172, %p173
    %p176 = scmp.ne.s32.totalorder %s161, %s175
    %p177 = scmp.eq.s32.totalorder %s25, 0
    %p178 = por %p176, %p177
    %s180 = sadd.s32 %s179, 1
    %p183 = scmp.eq.s32.totalorder %s19, 3
    %p184 = scmp.ne.s32.totalorder %s179, %s181
    %p185 = scmp.eq.s32.totalorder %s19, 0
    %p186 = por %p184, %p185
    %p187 = scmp.ne.s32.totalorder %s179, %s181
    %p188 = scmp.eq.s32.totalorder %s24, 3
    %p189 = por %p187, %p188
    %p190 = scmp.ne.s32.totalorder %s181, %s182
    %p191 = scmp.eq.s32.totalorder %s24, 0
    %p192 = por %p190, %p191
    %p193 = scmp.ne.s32.totalorder %s181, %s182
    %p194 = scmp.eq.s32.totalorder %s25, 3
    %p195 = por %p193, %p194
    %p197 = scmp.ne.s32.totalorder %s182, %s196
    %p198 = scmp.eq.s32.totalorder %s25, 0
    %p199 = por %p197, %p198
    %s201 = sadd.s32 %s200, 1
    %p204 = scmp.eq.s32.totalorder %s19, 3
    %p205 = scmp.ne.s32.totalorder %s200, %s202
    %p206 = scmp.eq.s32.totalorder %s19, 0
    %p207 = por %p205, %p206
    %p208 = scmp.ne.s32.totalorder %s200, %s202
    %p209 = scmp.eq.s32.totalorder %s24, 3
    %p210 = por %p208, %p209
    %p211 = scmp.ne.s32.totalorder %s202, %s203
    %p212 = scmp.eq.s32.totalorder %s24, 0
    %p213 = por %p211, %p212
    %p214 = scmp.ne.s32.totalorder %s202, %s203
    %p215 = scmp.eq.s32.totalorder %s25, 3
    %p216 = por %p214, %p215
    %p218 = scmp.ne.s32.totalorder %s203, %s217
    %p219 = scmp.eq.s32.totalorder %s25, 0
    %p220 = por %p218, %p219
    %s222 = sadd.s32 %s221, 1
    %p225 = scmp.eq.s32.totalorder %s19, 3
    %p226 = scmp.ne.s32.totalorder %s221, %s223
    %p227 = scmp.eq.s32.totalorder %s19, 0
    %p228 = por %p226, %p227
    %p229 = scmp.ne.s32.totalorder %s221, %s223
    %p230 = scmp.eq.s32.totalorder %s24, 3
    %p231 = por %p229, %p230
    %p232 = scmp.ne.s32.totalorder %s223, %s224
    %p233 = scmp.eq.s32.totalorder %s24, 0
    %p234 = por %p232, %p233
    %p235 = scmp.ne.s32.totalorder %s223, %s224
    %p236 = scmp.eq.s32.totalorder %s25, 3
    %p237 = por %p235, %p236
    %p239 = scmp.ne.s32.totalorder %s224, %s238
    %p240 = scmp.eq.s32.totalorder %s25, 0
    %p241 = por %p239, %p240
    %s243 = sadd.s32 %s242, 1
    %p246 = scmp.eq.s32.totalorder %s19, 3
    %p247 = scmp.ne.s32.totalorder %s242, %s244
    %p248 = scmp.eq.s32.totalorder %s19, 0
    %p249 = por %p247, %p248
    %p250 = scmp.ne.s32.totalorder %s242, %s244
    %p251 = scmp.eq.s32.totalorder %s24, 3
    %p252 = por %p250, %p251
    %p253 = scmp.ne.s32.totalorder %s244, %s245
    %p254 = scmp.eq.s32.totalorder %s24, 0
    %p255 = por %p253, %p254
    %p256 = scmp.ne.s32.totalorder %s244, %s245
    %p257 = scmp.eq.s32.totalorder %s25, 3
    %p258 = por %p256, %p257
    %p260 = scmp.ne.s32.totalorder %s245, %s259
    %p261 = scmp.eq.s32.totalorder %s25, 0
    %p262 = por %p260, %p261
    %s264 = sadd.s32 %s263, 1
    %p267 = scmp.eq.s32.totalorder %s19, 3
    %p268 = scmp.ne.s32.totalorder %s263, %s265
    %p269 = scmp.eq.s32.totalorder %s19, 0
    %p270 = por %p268, %p269
    %p271 = scmp.ne.s32.totalorder %s263, %s265
    %p272 = scmp.eq.s32.totalorder %s24, 3
    %p273 = por %p271, %p272
    %p274 = scmp.ne.s32.totalorder %s265, %s266
    %p275 = scmp.eq.s32.totalorder %s24, 0
    %p276 = por %p274, %p275
    %p277 = scmp.ne.s32.totalorder %s265, %s266
    %p278 = scmp.eq.s32.totalorder %s25, 3
    %p279 = por %p277, %p278
    %p281 = scmp.ne.s32.totalorder %s266, %s280
    %p282 = scmp.eq.s32.totalorder %s25, 0
    %p283 = por %p281, %p282
    %s285 = sadd.s32 %s284, 1
    %p288 = scmp.eq.s32.totalorder %s19, 3
    %p289 = scmp.ne.s32.totalorder %s284, %s286
    %p290 = scmp.eq.s32.totalorder %s19, 0
    %p291 = por %p289, %p290
    %p292 = scmp.ne.s32.totalorder %s284, %s286
    %p293 = scmp.eq.s32.totalorder %s24, 3
    %p294 = por %p292, %p293
    %p295 = scmp.ne.s32.totalorder %s286, %s287
    %p296 = scmp.eq.s32.totalorder %s24, 0
    %p297 = por %p295, %p296
    %p298 = scmp.ne.s32.totalorder %s286, %s287
    %p299 = scmp.eq.s32.totalorder %s25, 3
    %p300 = por %p298, %p299
    %p302 = scmp.ne.s32.totalorder %s287, %s301
    %p303 = scmp.eq.s32.totalorder %s25, 0
    %p304 = por %p302, %p303
    %s305 = ssub.s32 %s19, %s26
    %p306 = scmp.eq.s32.totalorder %s305, 0
    %s308 = sadd.s32 %s307, 1
    %s309 = scalar_select %p306, %s307, %s308
    %p312 = pneg %p306
    %p313 = scmp.eq.s32.totalorder %s19, 3
    %p314 = por %p312, %p313
    %p315 = scmp.ne.s32.totalorder %s307, %s310
    %p316 = scmp.eq.s32.totalorder %s19, 0
    %p317 = por %p315, %p316
    %p318 = scmp.ne.s32.totalorder %s307, %s310
    %p319 = scmp.eq.s32.totalorder %s24, 3
    %p320 = por %p318, %p319
    %p321 = scmp.ne.s32.totalorder %s310, %s311
    %p322 = scmp.eq.s32.totalorder %s24, 0
    %p323 = por %p321, %p322
    %p324 = scmp.ne.s32.totalorder %s310, %s311
    %p325 = scmp.eq.s32.totalorder %s25, 3
    %p326 = por %p324, %p325
    %p328 = scmp.ne.s32.totalorder %s311, %s327
    %p329 = scmp.eq.s32.totalorder %s25, 0
    %p330 = por %p328, %p329
    %p331 = scmp.le.s32.totalorder 1, %s19
    %p332 = scmp.lt.s32.totalorder %s19, 5
    %p333 = pnand %p331, %p332
    %p334 = pneg %p333
    // Predicated region
    $region9: #{tpu_custom_call.1} parent=5 // pred_check
      _
    $region10: #{tpu_custom_call.1} parent=5 // pred_check_branch
      %336 = sbr.rel (%p333) target = $region12
    $region11: #{tpu_custom_call.1} parent=5 // pred_region
      %s337 = ssub.s32 %s19, 1
      // Predicated region
      $region13: #{tpu_custom_call.1} parent=11 // pred_check
        %p338 = pneg %p66
      $region14: #{tpu_custom_call.1} parent=11 // pred_check_branch
        %340 = sbr.rel (%p338) target = $region16
      $region15: #{tpu_custom_call.1} parent=11 // pred_region
        _
      $region16: #{tpu_custom_call.1} parent=11 // pred_fallthru
        _
      // Predicated region
      $region17: #{tpu_custom_call.1} parent=11 // pred_check
        %p341 = pneg %p87
      $region18: #{tpu_custom_call.1} parent=11 // pred_check_branch
        %343 = sbr.rel (%p341) target = $region20
      $region19: #{tpu_custom_call.1} parent=11 // pred_region
        _
      $region20: #{tpu_custom_call.1} parent=11 // pred_fallthru
        _
      // Predicated region
      $region21: #{tpu_custom_call.1} parent=11 // pred_check
        %p344 = pneg %p108
      $region22: #{tpu_custom_call.1} parent=11 // pred_check_branch
        %346 = sbr.rel (%p344) target = $region24
      $region23: #{tpu_custom_call.1} parent=11 // pred_region
        _
      $region24: #{tpu_custom_call.1} parent=11 // pred_fallthru
        _
      // Predicated region
      $region25: #{tpu_custom_call.1} parent=11 // pred_check
        %p347 = pneg %p129
      $region26: #{tpu_custom_call.1} parent=11 // pred_check_branch
        %349 = sbr.rel (%p347) target = $region28
      $region27: #{tpu_custom_call.1} parent=11 // pred_region
        _
      $region28: #{tpu_custom_call.1} parent=11 // pred_fallthru
        _
      // Predicated region
      $region29: #{tpu_custom_call.1} parent=11 // pred_check
        %p350 = pneg %p150
      $region30: #{tpu_custom_call.1} parent=11 // pred_check_branch
        %352 = sbr.rel (%p350) target = $region32
      $region31: #{tpu_custom_call.1} parent=11 // pred_region
        _
      $region32: #{tpu_custom_call.1} parent=11 // pred_fallthru
        _
      // Predicated region
      $region33: #{tpu_custom_call.1} parent=11 // pred_check
        %p353 = pneg %p171
      $region34: #{tpu_custom_call.1} parent=11 // pred_check_branch
        %355 = sbr.rel (%p353) target = $region36
      $region35: #{tpu_custom_call.1} parent=11 // pred_region
        _
      $region36: #{tpu_custom_call.1} parent=11 // pred_fallthru
        _
      // Predicated region
      $region37: #{tpu_custom_call.1} parent=11 // pred_check
        %p356 = pneg %p192
      $region38: #{tpu_custom_call.1} parent=11 // pred_check_branch
        %358 = sbr.rel (%p356) target = $region40
      $region39: #{tpu_custom_call.1} parent=11 // pred_region
        _
      $region40: #{tpu_custom_call.1} parent=11 // pred_fallthru
        _
      // Predicated region
      $region41: #{tpu_custom_call.1} parent=11 // pred_check
        %p359 = pneg %p213
      $region42: #{tpu_custom_call.1} parent=11 // pred_check_branch
        %361 = sbr.rel (%p359) target = $region44
      $region43: #{tpu_custom_call.1} parent=11 // pred_region
        _
      $region44: #{tpu_custom_call.1} parent=11 // pred_fallthru
        _
      // Predicated region
      $region45: #{tpu_custom_call.1} parent=11 // pred_check
        %p362 = pneg %p234
      $region46: #{tpu_custom_call.1} parent=11 // pred_check_branch
        %364 = sbr.rel (%p362) target = $region48
      $region47: #{tpu_custom_call.1} parent=11 // pred_region
        _
      $region48: #{tpu_custom_call.1} parent=11 // pred_fallthru
        _
      // Predicated region
      $region49: #{tpu_custom_call.1} parent=11 // pred_check
        %p365 = pneg %p255
      $region50: #{tpu_custom_call.1} parent=11 // pred_check_branch
        %367 = sbr.rel (%p365) target = $region52
      $region51: #{tpu_custom_call.1} parent=11 // pred_region
        _
      $region52: #{tpu_custom_call.1} parent=11 // pred_fallthru
        _
      // Predicated region
      $region53: #{tpu_custom_call.1} parent=11 // pred_check
        %p368 = pneg %p276
      $region54: #{tpu_custom_call.1} parent=11 // pred_check_branch
        %370 = sbr.rel (%p368) target = $region56
      $region55: #{tpu_custom_call.1} parent=11 // pred_region
        _
      $region56: #{tpu_custom_call.1} parent=11 // pred_fallthru
        _
      // Predicated region
      $region57: #{tpu_custom_call.1} parent=11 // pred_check
        %p371 = pneg %p297
      $region58: #{tpu_custom_call.1} parent=11 // pred_check_branch
        %373 = sbr.rel (%p371) target = $region60
      $region59: #{tpu_custom_call.1} parent=11 // pred_region
        _
      $region60: #{tpu_custom_call.1} parent=11 // pred_fallthru
        _
    $region12: #{tpu_custom_call.1} parent=5 // pred_fallthru
      _
    %p374 = scmp.lt.s32.totalorder %s19, 4
    // Predicated region
    $region61: #{tpu_custom_call.1} parent=5 // pred_check
      %p375 = pneg %p374
    $region62: #{tpu_custom_call.1} parent=5 // pred_check_branch
      %377 = sbr.rel (%p375) target = $region64
    $region63: #{tpu_custom_call.1} parent=5 // pred_region
      // Predicated region
      $region65: #{tpu_custom_call.1} parent=63 // pred_check
        %p378 = pneg %p39
      $region66: #{tpu_custom_call.1} parent=63 // pred_check_branch
        %380 = sbr.rel (%p378) target = $region68
      $region67: #{tpu_custom_call.1} parent=63 // pred_region
        %s381 = smul.u32 2, %s19
        %p382 = scmp.lt.s32.totalorder %s381, 7
        %s383 = scalar_select %p382, %s381, 7
        %s384 = smul.addr %s383, 8
        %s385 = scalar_lea.vmem %s0, %s384
        %s386 = smul.u32 2, %s19
      $region68: #{tpu_custom_call.1} parent=63 // pred_fallthru
        _
    $region64: #{tpu_custom_call.1} parent=5 // pred_fallthru
      _
    %p387 = scmp.le.s32.totalorder 1, %s19
    %p388 = scmp.lt.s32.totalorder %s19, 5
    %p389 = pnand %p387, %p388
    %p390 = pneg %p389
    // Predicated region
    $region69: #{tpu_custom_call.1} parent=5 // pred_check
      _
    $region70: #{tpu_custom_call.1} parent=5 // pred_check_branch
      %392 = sbr.rel (%p389) target = $region72
    $region71: #{tpu_custom_call.1} parent=5 // pred_region
      %s393 = ssub.s32 %s19, 1
      %s394 = smul.u32 2, %s24
      %p395 = scmp.lt.s32.totalorder %s394, 7
      %s396 = scalar_select %p395, %s394, 7
      %s397 = smul.addr %s396, 8
      %s398 = scalar_lea.vmem %s0, %s397
      %p399 = pneg %p45
      %p400 = pneg %p42
      %p401 = pneg %p66
      %p402 = pneg %p63
      %p403 = pneg %p87
      %p404 = pneg %p84
      %p405 = pneg %p108
      %p406 = pneg %p105
      %p407 = pneg %p129
      %p408 = pneg %p126
      %p409 = pneg %p150
      %p410 = pneg %p147
      %p411 = pneg %p171
      %p412 = pneg %p168
      %p413 = pneg %p192
      %p414 = pneg %p189
      %p415 = pneg %p213
      %p416 = pneg %p210
      %p417 = pneg %p234
      %p418 = pneg %p231
      %p419 = pneg %p255
      %p420 = pneg %p252
      %p421 = pneg %p276
      %p422 = pneg %p273
      %p423 = pneg %p297
      %p424 = pneg %p294
      %p425 = pneg %p323
      %p426 = pneg %p320
      %s427 = smul.u32 2, %s24
      %p428 = scmp.lt.s32.totalorder %s427, 7
      %s429 = scalar_select %p428, %s427, 7
      %s430 = smul.addr %s429, 8
      %s431 = scalar_lea.vmem %s13, %s430
      %s432 = smul.u32 2, %s24
      %p433 = scmp.lt.s32.totalorder %s432, 7
      %s434 = scalar_select %p433, %s432, 7
      %s435 = smul.addr %s434, 8
      %s436 = scalar_lea.vmem %s0, %s435
      %s437 = smul.u32 2, %s24
      %s438 = smul.u32 2, %s24
      %p439 = scmp.lt.s32.totalorder %s438, 7
      %s440 = scalar_select %p439, %s438, 7
      %s441 = smul.addr %s440, 8
      %s442 = scalar_lea.vmem %s13, %s441
      %s443 = smul.u32 2, %s24
      %v444 = vld [vmem:[%s436] sm:$0xff]
      %v445 = vld [vmem:[%s436 + $0x8] sm:$0xff]
      %v446 = vld [vmem:[%s1] sm:$0xf]
      %v447 = vld [vmem:[%s2] sm:$0x1]
      %v449 = vlaneseq
      %v450 = vshrl.u32 %v449, 7
      %v451 = vsub.s32 0, %v450
      %v452 = vrot.slane %v447, %v451
      %vm454 = vcmask 31744
      %v456 = vsel %vm454, %v444, 0
      %v459 = vsel %vm454, %v445, 0
      %vm461 = vcmask 1043456
      %v463 = vsel %vm461, %v446, 0
      %465 = vmatprep.subr.mxu0 0.0
      %466 = vmatpush1.msra.mxu0 %v463
      %467 = vmatprep.subr.mxu0 0.0
      %468 = vmatpush1.msra.mxu0 0.0
      %469 = vmatprep.subr.mxu0 0.0
      %470 = vmatpush1.msra.mxu0 0.0
      %471 = vmatprep.subr.mxu0 0.0
      %472 = vmatpush1.msra.mxu0 0.0
      %473 = vmatprep.subr.mxu0 0.0
      %474 = vmatpush1.msra.mxu0 0.0
      %475 = vmatprep.subr.mxu0 0.0
      %476 = vmatpush1.msra.mxu0 0.0
      %477 = vmatprep.subr.mxu0 0.0
      %478 = vmatpush1.msra.mxu0 0.0
      %479 = vmatprep.subr.mxu0 0.0
      %480 = vmatpush1.msra.mxu0 0.0
      %481 = vmatprep.subr.mxu0 0.0
      %482 = vmatpush1.msra.mxu0 0.0
      %483 = vmatprep.subr.mxu0 0.0
      %484 = vmatpush1.msra.mxu0 0.0
      %485 = vmatprep.subr.mxu0 0.0
      %486 = vmatpush1.msra.mxu0 0.0
      %487 = vmatprep.subr.mxu0 0.0
      %488 = vmatpush1.msra.mxu0 0.0
      %489 = vmatprep.subr.mxu0 0.0
      %490 = vmatpush1.msra.mxu0 0.0
      %491 = vmatprep.subr.mxu0 0.0
      %492 = vmatpush1.msra.mxu0 0.0
      %493 = vmatprep.subr.mxu0 0.0
      %494 = vmatpush1.msra.mxu0 0.0
      %495 = vmatprep.subr.mxu0 0.0
      %496 = vmatpush1.msra.mxu0 0.0
      %497 = vmatprep.subr.mxu0 0.0
      %498 = vmatpush1.msra.mxu0 0.0
      %499 = vmatprep.subr.mxu0 0.0
      %500 = vmatpush1.msra.mxu0 0.0
      %501 = vmatprep.subr.mxu0 0.0
      %502 = vmatpush1.msra.mxu0 0.0
      %503 = vmatprep.subr.mxu0 0.0
      %504 = vmatpush1.msra.mxu0 0.0
      %505 = vmatprep.subr.mxu0 0.0
      %506 = vmatpush1.msra.mxu0 0.0
      %507 = vmatprep.subr.mxu0 0.0
      %508 = vmatpush1.msra.mxu0 0.0
      %509 = vmatprep.subr.mxu0 0.0
      %510 = vmatpush1.msra.mxu0 0.0
      %511 = vmatprep.subr.mxu0 0.0
      %512 = vmatpush1.msra.mxu0 0.0
      %513 = vmatprep.subr.mxu0 0.0
      %514 = vmatpush1.msra.mxu0 0.0
      %515 = vmatprep.subr.mxu0 0.0
      %516 = vmatpush1.msra.mxu0 0.0
      %517 = vmatprep.subr.mxu0 0.0
      %518 = vmatpush1.msra.mxu0 0.0
      %519 = vmatprep.subr.mxu0 0.0
      %520 = vmatpush1.msra.mxu0 0.0
      %521 = vmatprep.subr.mxu0 0.0
      %522 = vmatpush1.msra.mxu0 0.0
      %523 = vmatprep.subr.mxu0 0.0
      %524 = vmatpush1.msra.mxu0 0.0
      %525 = vmatprep.subr.mxu0 0.0
      %526 = vmatpush1.msra.mxu0 0.0
      %527 = vmatprep.subr.mxu0 0.0
      %528 = vmatpush1.msra.mxu0 0.0
      %529 = vmatprep.mubr.f32.mxu0 0.0
      %530 = vmatmul.mubr.f32.gmra.mrb[0].mxu0 %v456
      %v531 = vpop.f32.mrb[0].mxu0
      %v532 = vadd.f32 %v452, %v531
      %v533 = vpop.f32.mrb[0].mxu0
      %534 = vmatprep.mubr.f32.mxu0 0.0
      %535 = vmatmul.mubr.f32.gmra.mrb[0].mxu0 %v459
      %v536 = vpop.f32.mrb[0].mxu0
      %v537 = vadd.f32 %v452, %v536
      %v538 = vpop.f32.mrb[0].mxu0
      %539 = vdwg.mxu0
      %v540 = vld [vmem:[%s3] sm:$0x1]
      %v541 = vld [vmem:[%s4] sm:$0x1]
      %vm542 = vcmask 261120
      %v543 = vsel %vm542, %v532, 0.0
      %544 = vadd.xlane.f32.xlu0 %v543
      %v545 = vpop.xlane.xlu0 %544
      %v546 = vsel %vm542, %v537, 0.0
      %547 = vadd.xlane.f32.xlu0 %v546
      %v548 = vpop.xlane.xlu0 %547
      %v549 = vrcp.pop 32.0
      %v550 = vmul.f32 %v545, %v549
      %v551 = vmul.f32 %v548, %v549
      %v552 = vsub.f32 %v532, %v550
      %v553 = vsub.f32 %v537, %v551
      %v554 = vmul.f32 %v552, %v552
      %v555 = vmul.f32 %v553, %v553
      %v556 = vsel %vm542, %v554, 0.0
      %557 = vadd.xlane.f32.xlu0 %v556
      %v558 = vpop.xlane.xlu0 %557
      %v559 = vsel %vm542, %v555, 0.0
      %560 = vadd.xlane.f32.xlu0 %v559
      %v561 = vpop.xlane.xlu0 %560
      %v562 = vmul.f32 %v558, %v549
      %v563 = vmul.f32 %v561, %v549
      %v564 = vadd.f32 %v562, 1e-05
      %v565 = vadd.f32 %v563, 1e-05
      %v566 = vrsqrt.pop %v564
      %v567 = vrsqrt.pop %v565
      %v568 = vmul.f32 %v552, %v566
      %v569 = vmul.f32 %v553, %v567
      %v571 = vlaneseq
      %v572 = vshrl.u32 %v571, 7
      %v573 = vsub.s32 0, %v572
      %v574 = vrot.slane %v540, %v573
      %v576 = vmul.f32 %v568, %v574
      %v577 = vmul.f32 %v569, %v574
      %v579 = vlaneseq
      %v580 = vshrl.u32 %v579, 7
      %v581 = vsub.s32 0, %v580
      %v582 = vrot.slane %v541, %v581
      %v584 = vadd.f32 %v576, %v582
      %v585 = vadd.f32 %v577, %v582
      %v586 = vmax.f32 %v584, 0.0
      %v587 = vmax.f32 %v585, 0.0
      %v588 = vld [vmem:[%s5] sm:$0xff]
      %v589 = vld [vmem:[%s5 + $0x8] sm:$0xff]
      %v590 = vld [vmem:[%s5 + $0x10] sm:$0xff]
      %v591 = vld [vmem:[%s5 + $0x18] sm:$0xff]
      %v592 = vld [vmem:[%s6] sm:$0x1]
      %v594 = vlaneseq
      %v595 = vshrl.u32 %v594, 7
      %v596 = vsub.s32 0, %v595
      %v597 = vrot.slane %v592, %v596
      %v600 = vsel %vm542, %v586, 0
      %v603 = vsel %vm542, %v587, 0
      %605 = vmatprep.subr.mxu0 0.0
      %606 = vmatpush1.msra.mxu0 %v588
      %607 = vmatprep.subr.mxu0 0.0
      %608 = vmatpush1.msra.mxu0 %v589
      %609 = vmatprep.subr.mxu0 0.0
      %610 = vmatpush1.msra.mxu0 %v590
      %611 = vmatprep.subr.mxu0 0.0
      %612 = vmatpush1.msra.mxu0 %v591
      %613 = vmatprep.subr.mxu0 0.0
      %614 = vmatpush1.msra.mxu0 0.0
      %615 = vmatprep.subr.mxu0 0.0
      %616 = vmatpush1.msra.mxu0 0.0
      %617 = vmatprep.subr.mxu0 0.0
      %618 = vmatpush1.msra.mxu0 0.0
      %619 = vmatprep.subr.mxu0 0.0
      %620 = vmatpush1.msra.mxu0 0.0
      %621 = vmatprep.subr.mxu0 0.0
      %622 = vmatpush1.msra.mxu0 0.0
      %623 = vmatprep.subr.mxu0 0.0
      %624 = vmatpush1.msra.mxu0 0.0
      %625 = vmatprep.subr.mxu0 0.0
      %626 = vmatpush1.msra.mxu0 0.0
      %627 = vmatprep.subr.mxu0 0.0
      %628 = vmatpush1.msra.mxu0 0.0
      %629 = vmatprep.subr.mxu0 0.0
      %630 = vmatpush1.msra.mxu0 0.0
      %631 = vmatprep.subr.mxu0 0.0
      %632 = vmatpush1.msra.mxu0 0.0
      %633 = vmatprep.subr.mxu0 0.0
      %634 = vmatpush1.msra.mxu0 0.0
      %635 = vmatprep.subr.mxu0 0.0
      %636 = vmatpush1.msra.mxu0 0.0
      %637 = vmatprep.subr.mxu0 0.0
      %638 = vmatpush1.msra.mxu0 0.0
      %639 = vmatprep.subr.mxu0 0.0
      %640 = vmatpush1.msra.mxu0 0.0
      %641 = vmatprep.subr.mxu0 0.0
      %642 = vmatpush1.msra.mxu0 0.0
      %643 = vmatprep.subr.mxu0 0.0
      %644 = vmatpush1.msra.mxu0 0.0
      %645 = vmatprep.subr.mxu0 0.0
      %646 = vmatpush1.msra.mxu0 0.0
      %647 = vmatprep.subr.mxu0 0.0
      %648 = vmatpush1.msra.mxu0 0.0
      %649 = vmatprep.subr.mxu0 0.0
      %650 = vmatpush1.msra.mxu0 0.0
      %651 = vmatprep.subr.mxu0 0.0
      %652 = vmatpush1.msra.mxu0 0.0
      %653 = vmatprep.subr.mxu0 0.0
      %654 = vmatpush1.msra.mxu0 0.0
      %655 = vmatprep.subr.mxu0 0.0
      %656 = vmatpush1.msra.mxu0 0.0
      %657 = vmatprep.subr.mxu0 0.0
      %658 = vmatpush1.msra.mxu0 0.0
      %659 = vmatprep.subr.mxu0 0.0
      %660 = vmatpush1.msra.mxu0 0.0
      %661 = vmatprep.subr.mxu0 0.0
      %662 = vmatpush1.msra.mxu0 0.0
      %663 = vmatprep.subr.mxu0 0.0
      %664 = vmatpush1.msra.mxu0 0.0
      %665 = vmatprep.subr.mxu0 0.0
      %666 = vmatpush1.msra.mxu0 0.0
      %667 = vmatprep.subr.mxu0 0.0
      %668 = vmatpush1.msra.mxu0 0.0
      %669 = vmatprep.mubr.f32.mxu0 0.0
      %670 = vmatmul.mubr.f32.gmra.mrb[0].mxu0 %v600
      %v671 = vpop.f32.mrb[0].mxu0
      %v672 = vadd.f32 %v597, %v671
      %v673 = vpop.f32.mrb[0].mxu0
      %674 = vmatprep.mubr.f32.mxu0 0.0
      %675 = vmatmul.mubr.f32.gmra.mrb[0].mxu0 %v603
      %v676 = vpop.f32.mrb[0].mxu0
      %v677 = vadd.f32 %v597, %v676
      %v678 = vpop.f32.mrb[0].mxu0
      %679 = vdwg.mxu0
      %v680 = vld [vmem:[%s7] sm:$0x1]
      %v681 = vld [vmem:[%s8] sm:$0x1]
      %v682 = vsel %vm542, %v672, 0.0
      %683 = vadd.xlane.f32.xlu0 %v682
      %v684 = vpop.xlane.xlu0 %683
      %v685 = vsel %vm542, %v677, 0.0
      %686 = vadd.xlane.f32.xlu0 %v685
      %v687 = vpop.xlane.xlu0 %686
      %v688 = vmul.f32 %v684, %v549
      %v689 = vmul.f32 %v687, %v549
      %v690 = vsub.f32 %v672, %v688
      %v691 = vsub.f32 %v677, %v689
      %v692 = vmul.f32 %v690, %v690
      %v693 = vmul.f32 %v691, %v691
      %v694 = vsel %vm542, %v692, 0.0
      %695 = vadd.xlane.f32.xlu0 %v694
      %v696 = vpop.xlane.xlu0 %695
      %v697 = vsel %vm542, %v693, 0.0
      %698 = vadd.xlane.f32.xlu0 %v697
      %v699 = vpop.xlane.xlu0 %698
      %v700 = vmul.f32 %v696, %v549
      %v701 = vmul.f32 %v699, %v549
      %v702 = vadd.f32 %v700, 1e-05
      %v703 = vadd.f32 %v701, 1e-05
      %v704 = vrsqrt.pop %v702
      %v705 = vrsqrt.pop %v703
      %v706 = vmul.f32 %v690, %v704
      %v707 = vmul.f32 %v691, %v705
      %v709 = vlaneseq
      %v710 = vshrl.u32 %v709, 7
      %v711 = vsub.s32 0, %v710
      %v712 = vrot.slane %v680, %v711
      %v714 = vmul.f32 %v706, %v712
      %v715 = vmul.f32 %v707, %v712
      %v717 = vlaneseq
      %v718 = vshrl.u32 %v717, 7
      %v719 = vsub.s32 0, %v718
      %v720 = vrot.slane %v681, %v719
      %v722 = vadd.f32 %v714, %v720
      %v723 = vadd.f32 %v715, %v720
      %v724 = vmax.f32 %v722, 0.0
      %v725 = vmax.f32 %v723, 0.0
      %v726 = vld [vmem:[%s9] sm:$0xff]
      %v727 = vld [vmem:[%s9 + $0x8] sm:$0xff]
      %v728 = vld [vmem:[%s9 + $0x10] sm:$0xff]
      %v729 = vld [vmem:[%s9 + $0x18] sm:$0xff]
      %v730 = vld [vmem:[%s10] sm:$0x1]
      %v732 = vlaneseq
      %v733 = vshrl.u32 %v732, 7
      %v734 = vsub.s32 0, %v733
      %v735 = vrot.slane %v730, %v734
      %v738 = vsel %vm542, %v724, 0
      %v741 = vsel %vm542, %v725, 0
      %743 = vmatprep.subr.mxu0 0.0
      %744 = vmatpush1.msra.mxu0 %v726
      %745 = vmatprep.subr.mxu0 0.0
      %746 = vmatpush1.msra.mxu0 %v727
      %747 = vmatprep.subr.mxu0 0.0
      %748 = vmatpush1.msra.mxu0 %v728
      %749 = vmatprep.subr.mxu0 0.0
      %750 = vmatpush1.msra.mxu0 %v729
      %751 = vmatprep.subr.mxu0 0.0
      %752 = vmatpush1.msra.mxu0 0.0
      %753 = vmatprep.subr.mxu0 0.0
      %754 = vmatpush1.msra.mxu0 0.0
      %755 = vmatprep.subr.mxu0 0.0
      %756 = vmatpush1.msra.mxu0 0.0
      %757 = vmatprep.subr.mxu0 0.0
      %758 = vmatpush1.msra.mxu0 0.0
      %759 = vmatprep.subr.mxu0 0.0
      %760 = vmatpush1.msra.mxu0 0.0
      %761 = vmatprep.subr.mxu0 0.0
      %762 = vmatpush1.msra.mxu0 0.0
      %763 = vmatprep.subr.mxu0 0.0
      %764 = vmatpush1.msra.mxu0 0.0
      %765 = vmatprep.subr.mxu0 0.0
      %766 = vmatpush1.msra.mxu0 0.0
      %767 = vmatprep.subr.mxu0 0.0
      %768 = vmatpush1.msra.mxu0 0.0
      %769 = vmatprep.subr.mxu0 0.0
      %770 = vmatpush1.msra.mxu0 0.0
      %771 = vmatprep.subr.mxu0 0.0
      %772 = vmatpush1.msra.mxu0 0.0
      %773 = vmatprep.subr.mxu0 0.0
      %774 = vmatpush1.msra.mxu0 0.0
      %775 = vmatprep.subr.mxu0 0.0
      %776 = vmatpush1.msra.mxu0 0.0
      %777 = vmatprep.subr.mxu0 0.0
      %778 = vmatpush1.msra.mxu0 0.0
      %779 = vmatprep.subr.mxu0 0.0
      %780 = vmatpush1.msra.mxu0 0.0
      %781 = vmatprep.subr.mxu0 0.0
      %782 = vmatpush1.msra.mxu0 0.0
      %783 = vmatprep.subr.mxu0 0.0
      %784 = vmatpush1.msra.mxu0 0.0
      %785 = vmatprep.subr.mxu0 0.0
      %786 = vmatpush1.msra.mxu0 0.0
      %787 = vmatprep.subr.mxu0 0.0
      %788 = vmatpush1.msra.mxu0 0.0
      %789 = vmatprep.subr.mxu0 0.0
      %790 = vmatpush1.msra.mxu0 0.0
      %791 = vmatprep.subr.mxu0 0.0
      %792 = vmatpush1.msra.mxu0 0.0
      %793 = vmatprep.subr.mxu0 0.0
      %794 = vmatpush1.msra.mxu0 0.0
      %795 = vmatprep.subr.mxu0 0.0
      %796 = vmatpush1.msra.mxu0 0.0
      %797 = vmatprep.subr.mxu0 0.0
      %798 = vmatpush1.msra.mxu0 0.0
      %799 = vmatprep.subr.mxu0 0.0
      %800 = vmatpush1.msra.mxu0 0.0
      %801 = vmatprep.subr.mxu0 0.0
      %802 = vmatpush1.msra.mxu0 0.0
      %803 = vmatprep.subr.mxu0 0.0
      %804 = vmatpush1.msra.mxu0 0.0
      %805 = vmatprep.subr.mxu0 0.0
      %806 = vmatpush1.msra.mxu0 0.0
      %807 = vmatprep.mubr.f32.mxu0 0.0
      %808 = vmatmul.mubr.f32.gmra.mrb[0].mxu0 %v738
      %v809 = vpop.f32.mrb[0].mxu0
      %v810 = vadd.f32 %v735, %v809
      %v811 = vpop.f32.mrb[0].mxu0
      %812 = vmatprep.mubr.f32.mxu0 0.0
      %813 = vmatmul.mubr.f32.gmra.mrb[0].mxu0 %v741
      %v814 = vpop.f32.mrb[0].mxu0
      %v815 = vadd.f32 %v735, %v814
      %v816 = vpop.f32.mrb[0].mxu0
      %817 = vdwg.mxu0
      %v818 = vld [vmem:[%s11] sm:$0x1]
      %v819 = vld [vmem:[%s12] sm:$0x1]
      %v820 = vsel %vm542, %v810, 0.0
      %821 = vadd.xlane.f32.xlu0 %v820
      %v822 = vpop.xlane.xlu0 %821
      %v823 = vsel %vm542, %v815, 0.0
      %824 = vadd.xlane.f32.xlu0 %v823
      %v825 = vpop.xlane.xlu0 %824
      %v826 = vmul.f32 %v822, %v549
      %v827 = vmul.f32 %v825, %v549
      %v828 = vsub.f32 %v810, %v826
      %v829 = vsub.f32 %v815, %v827
      %v830 = vmul.f32 %v828, %v828
      %v831 = vmul.f32 %v829, %v829
      %v832 = vsel %vm542, %v830, 0.0
      %833 = vadd.xlane.f32.xlu0 %v832
      %v834 = vpop.xlane.xlu0 %833
      %v835 = vsel %vm542, %v831, 0.0
      %836 = vadd.xlane.f32.xlu0 %v835
      %v837 = vpop.xlane.xlu0 %836
      %v838 = vmul.f32 %v834, %v549
      %v839 = vmul.f32 %v837, %v549
      %v840 = vadd.f32 %v838, 1e-05
      %v841 = vadd.f32 %v839, 1e-05
      %v842 = vrsqrt.pop %v840
      %v843 = vrsqrt.pop %v841
      %v844 = vmul.f32 %v828, %v842
      %v845 = vmul.f32 %v829, %v843
      %v847 = vlaneseq
      %v848 = vshrl.u32 %v847, 7
      %v849 = vsub.s32 0, %v848
      %v850 = vrot.slane %v818, %v849
      %v852 = vmul.f32 %v844, %v850
      %v853 = vmul.f32 %v845, %v850
      %v855 = vlaneseq
      %v856 = vshrl.u32 %v855, 7
      %v857 = vsub.s32 0, %v856
      %v858 = vrot.slane %v819, %v857
      %v860 = vadd.f32 %v852, %v858
      %v861 = vadd.f32 %v853, %v858
      %862 = vst.msk [vmem:[%s442] sm:$0xff] %vm542, %v860
      %863 = vst.msk [vmem:[%s442 + $0x8] sm:$0xff] %vm542, %v861
      %s864 = smul.u32 2, %s24
      %p865 = scmp.lt.s32.totalorder %s864, 7
      %s866 = scalar_select %p865, %s864, 7
      %s867 = smul.addr %s866, 8
      %s868 = scalar_lea.vmem %s13, %s867
      // Predicated region
      $region73: #{tpu_custom_call.1} parent=71 // pred_check
        %p869 = pneg %p320
      $region74: #{tpu_custom_call.1} parent=71 // pred_check_branch
        %871 = sbr.rel (%p869) target = $region76
      $region75: #{tpu_custom_call.1} parent=71 // pred_region
        %s872 = smul.u32 2, %s24
      $region76: #{tpu_custom_call.1} parent=71 // pred_fallthru
        _
    $region72: #{tpu_custom_call.1} parent=5 // pred_fallthru
      _
    %p873 = scmp.le.s32.totalorder 2, %s19
    // Predicated region
    $region77: #{tpu_custom_call.1} parent=5 // pred_check
      %p874 = pneg %p873
    $region78: #{tpu_custom_call.1} parent=5 // pred_check_branch
      %876 = sbr.rel (%p874) target = $region80
    $region79: #{tpu_custom_call.1} parent=5 // pred_region
      %s877 = ssub.s32 %s19, 2
      // Predicated region
      $region81: #{tpu_custom_call.1} parent=79 // pred_check
        %p878 = pneg %p326
      $region82: #{tpu_custom_call.1} parent=79 // pred_check_branch
        %880 = sbr.rel (%p878) target = $region84
      $region83: #{tpu_custom_call.1} parent=79 // pred_region
        %s881 = smul.u32 2, %s25
        %p882 = scmp.lt.s32.totalorder %s881, 7
        %s883 = scalar_select %p882, %s881, 7
        %s884 = smul.addr %s883, 8
        %s885 = scalar_lea.vmem %s13, %s884
      $region84: #{tpu_custom_call.1} parent=79 // pred_fallthru
        _
    $region80: #{tpu_custom_call.1} parent=5 // pred_fallthru
      _
  $region6: #{tpu_custom_call.1} parent=0 // loop_footer
    %s23 = sadd.s32 1, %s19
  $region7: #{tpu_custom_call.1} parent=0 // loop_footer_branch
    %18 = sbr.rel target = $region3
  $region8: #{tpu_custom_call.1} parent=0 // loop_exit
    _

</llo_original>
